<compile_context>
chip_gen: v7x
topology: tpu7x:2x2x1
jax: 0.10.0
libtpu: 0.0.40
codegen_flags: <defaults>
</compile_context>

<pallas_src>
import functools

import jax
import jax.numpy as jnp
from jax.experimental import pallas as pl
from jax.experimental.pallas import tpu as pltpu


def _ctrl_passthrough_kernel(x_ref, u_ref, wx_ref, wu_ref, out_ref, *, n_ctrl):
    """One batch tile of CtrlPassthroughDynamics with fused linear dynamics.

    x_ref   : (bm, tilde_dim)          tilde_x tile (slice folded into wx)
    u_ref   : (bm, n_ctrl)             control tile
    wx_ref  : (tilde_dim, tilde_dim)   [[0,0],[0,A^T]] (f32)
    wu_ref  : (n_ctrl, tilde_dim)      [I_ctrl | B^T]  (f32)
    out_ref : (bm, tilde_dim)          cat((u, xtp1), dim=1)
    """
    u = u_ref[...]

    # out = u @ [I | B^T] + tilde_x @ [[0,0],[0,A^T]]   (f32 accumulation).
    acc = jnp.dot(u.astype(wu_ref.dtype), wu_ref[...],
                  preferred_element_type=jnp.float32)
    acc = acc + jnp.dot(x_ref[...].astype(wx_ref.dtype), wx_ref[...],
                        preferred_element_type=jnp.float32)

    # Single full-tile store of the fused result...
    out_ref[...] = acc.astype(out_ref.dtype)
    # ...then overwrite the first n_ctrl columns with raw u (prefix store at
    # lane offset 0: no lane rotate) so the passthrough is bit-exact like
    # torch.cat, regardless of the MXU f32 multi-pass behavior.
    out_ref[:, :n_ctrl] = u.astype(out_ref.dtype)


def ctrl_passthrough_dynamics(tilde_x, u, A, B, *, target_block_bytes=2 * 1024 * 1024):
    """Pallas implementation of CtrlPassthroughDynamics.forward with a linear
    `dynamics` (A: state transition, B: control matrix)."""
    tilde_x_dim = tilde_x.ndim
    u_dim = u.ndim
    if tilde_x_dim == 1:
        tilde_x = tilde_x[None, :]
    if u_dim == 1:
        u = u[None, :]

    batch, tilde_dim = tilde_x.shape
    n_ctrl = u.shape[1]
    n_state = tilde_dim - n_ctrl
    assert A.shape == (n_state, n_state)
    assert B.shape == (n_state, n_ctrl)

    out_dtype = tilde_x.dtype
    w_dtype = jnp.float32  # keep dynamics matrices in f32 even for bf16 activations

    # Fused weights (tiny, negligible HBM traffic):
    #   Wu = [I_ctrl | B^T]        (n_ctrl, tilde_dim)
    #   Wx = [[0, 0], [0, A^T]]    (tilde_dim, tilde_dim)
    Wu = jnp.concatenate(
        [jnp.eye(n_ctrl, dtype=w_dtype), B.T.astype(w_dtype)], axis=1)
    Wx = jnp.zeros((tilde_dim, tilde_dim), w_dtype).at[n_ctrl:, n_ctrl:].set(
        A.T.astype(w_dtype))

    itemsize = tilde_x.dtype.itemsize
    sub = {4: 8, 2: 16, 1: 32}.get(itemsize, 8)  # sublane packing multiple

    # Batch tile from bytes (amortize ~0.35us/step), rounded to sublane multiple.
    rows = max(sub, (target_block_bytes // max(1, tilde_dim * itemsize)) // sub * sub)
    if batch > rows:
        bm = rows
    elif batch >= 2 * sub and batch * tilde_dim * itemsize >= (1 << 20):
        # Enough work to be worth splitting across v7x's two TensorCores.
        bm = -(-((batch + 1) // 2) // sub) * sub
    else:
        bm = batch  # full-extent block (always a legal block shape)
    grid = (pl.cdiv(batch, bm),)

    # VMEM budget: 2 pipeline buffers x (x + u + out blocks) + weights.
    w_bytes = int((Wu.size + Wx.size) * 4)
    need = 2 * (bm * tilde_dim * itemsize
                + bm * n_ctrl * itemsize
                + bm * tilde_dim * out_dtype.itemsize
                + w_bytes)
    vmem_limit = int(min(48 * (1 << 20), max(32 * (1 << 20), 2 * need)))

    flops = 2 * batch * tilde_dim * tilde_dim + 2 * batch * n_ctrl * tilde_dim
    bytes_accessed = (batch * tilde_dim * itemsize
                      + batch * n_ctrl * itemsize
                      + batch * tilde_dim * out_dtype.itemsize
                      + w_bytes)

    kernel = functools.partial(_ctrl_passthrough_kernel, n_ctrl=n_ctrl)

    out = pl.pallas_call(
        kernel,
        out_shape=jax.ShapeDtypeStruct((batch, tilde_dim), out_dtype),
        grid_spec=pltpu.PrefetchScalarGridSpec(
            num_scalar_prefetch=0,
            grid=grid,
            in_specs=[
                pl.BlockSpec((bm, tilde_dim), lambda i: (i, 0)),
                pl.BlockSpec((bm, n_ctrl), lambda i: (i, 0)),
                # Weight tiles stay resident across the whole grid.
                pl.BlockSpec((tilde_dim, tilde_dim), lambda i: (0, 0)),
                pl.BlockSpec((n_ctrl, tilde_dim), lambda i: (0, 0)),
            ],
            out_specs=pl.BlockSpec((bm, tilde_dim), lambda i: (i, 0)),
        ),
        compiler_params=pltpu.CompilerParams(
            dimension_semantics=("parallel",),
            vmem_limit_bytes=vmem_limit,
        ),
        cost_estimate=pl.CostEstimate(
            flops=flops, transcendentals=0, bytes_accessed=bytes_accessed),
    )(tilde_x, u, Wx, Wu)

    if tilde_x_dim == 1:
        out = jnp.squeeze(out, axis=0)
    return out


def _reference(tilde_x, u, A, B):
    """Pure-JAX reference mirroring the PyTorch forward."""
    tilde_x_dim, u_dim = tilde_x.ndim, u.ndim
    if tilde_x_dim == 1:
        tilde_x = tilde_x[None, :]
    if u_dim == 1:
        u = u[None, :]
    n_ctrl = u.shape[1]
    x = tilde_x[:, n_ctrl:]
    xtp1 = x @ A.T + u @ B.T
    out = jnp.concatenate((u, xtp1), axis=1)
    if tilde_x_dim == 1:
        out = jnp.squeeze(out, axis=0)
    return out


if __name__ == "__main__":
    key = jax.random.PRNGKey(0)
    k1, k2, k3, k4 = jax.random.split(key, 4)

    batch, n_ctrl, n_state = 8, 4, 12
    tilde_dim = n_ctrl + n_state

    tilde_x = jax.random.normal(k1, (batch, tilde_dim), dtype=jnp.float32)
    u = jax.random.normal(k2, (batch, n_ctrl), dtype=jnp.float32)
    # Deterministic synthetic linear-dynamics parameters.
    A = 0.1 * jax.random.normal(k3, (n_state, n_state), dtype=jnp.float32) + jnp.eye(
        n_state, dtype=jnp.float32
    )
    B = 0.1 * jax.random.normal(k4, (n_state, n_ctrl), dtype=jnp.float32)

    # Batched path (single grid step).
    out = jax.block_until_ready(ctrl_passthrough_dynamics(tilde_x, u, A, B))
    ref = _reference(tilde_x, u, A, B)
    assert out.shape == (batch, tilde_dim)
    assert jnp.allclose(out, ref, atol=1e-5, rtol=1e-5), "mismatch vs reference"
    # u must pass through exactly (raw prefix store, not routed through MXU).
    assert jnp.array_equal(out[:, :n_ctrl], u), "u passthrough not exact"

    # Exercise the multi-block grid path (2 batch tiles of 16 rows).
    kb1, kb2 = jax.random.split(jax.random.PRNGKey(1))
    big_b = 32
    tilde_x_b = jax.random.normal(kb1, (big_b, tilde_dim), dtype=jnp.float32)
    u_b = jax.random.normal(kb2, (big_b, n_ctrl), dtype=jnp.float32)
    out_b = jax.block_until_ready(
        ctrl_passthrough_dynamics(tilde_x_b, u_b, A, B, target_block_bytes=1024)
    )
    ref_b = _reference(tilde_x_b, u_b, A, B)
    assert out_b.shape == (big_b, tilde_dim)
    assert jnp.allclose(out_b, ref_b, atol=1e-5, rtol=1e-5), "gridded mismatch"
    assert jnp.array_equal(out_b[:, :n_ctrl], u_b), "gridded u passthrough not exact"

    # Exercise the 1-D (unbatched) code path of the module.
    out1d = jax.block_until_ready(ctrl_passthrough_dynamics(tilde_x[0], u[0], A, B))
    ref1d = _reference(tilde_x[0], u[0], A, B)
    assert out1d.shape == (tilde_dim,)
    assert jnp.allclose(out1d, ref1d, atol=1e-5, rtol=1e-5), "1-D mismatch"

    print("KERNEL_OK")
</pallas_src>

<mosaic_0001>
module attributes {stable_mosaic.version = 11 : i64} {
  func.func @_ctrl_passthrough_kernel(%arg0: i32, %arg1: memref<8x16xf32, #tpu.memory_space<vmem>>, %arg2: memref<8x4xf32, #tpu.memory_space<vmem>>, %arg3: memref<16x16xf32, #tpu.memory_space<vmem>>, %arg4: memref<4x16xf32, #tpu.memory_space<vmem>>, %arg5: memref<8x16xf32, #tpu.memory_space<vmem>>) attributes {dimension_semantics = [#tpu.dimension_semantics<parallel>], iteration_bounds = array<i64: 1>, scalar_prefetch = 0 : i64, scratch_operands = 0 : i64, tpu.core_type = #tpu.core_type<tc>, window_params = [{transform_indices = @transform_0, window_bounds = array<i64: 8, 16>}, {transform_indices = @transform_1, window_bounds = array<i64: 8, 4>}, {pipeline_mode = #tpu.pipeline_mode<synchronous>, transform_indices = @transform_2, window_bounds = array<i64: 16, 16>}, {pipeline_mode = #tpu.pipeline_mode<synchronous>, transform_indices = @transform_3, window_bounds = array<i64: 4, 16>}, {transform_indices = @transform_4, window_bounds = array<i64: 8, 16>}]} {
    %c0 = arith.constant 0 : index
    %c0_0 = arith.constant 0 : index
    %0 = vector.load %arg2[%c0, %c0_0] : memref<8x4xf32, #tpu.memory_space<vmem>>, vector<8x4xf32>
    %c0_1 = arith.constant 0 : index
    %c0_2 = arith.constant 0 : index
    %1 = vector.load %arg4[%c0_1, %c0_2] : memref<4x16xf32, #tpu.memory_space<vmem>>, vector<4x16xf32>
    %cst = arith.constant dense<0.000000e+00> : vector<8x16xf32>
    %2 = tpu.matmul %0, %1, %cst {dimension_numbers = #tpu.dot_dimension_numbers<[1], [0], [0], [1], [0, 0, 1, 1], [], []>} : vector<8x4xf32>, vector<4x16xf32>, vector<8x16xf32> -> vector<8x16xf32>
    %c0_3 = arith.constant 0 : index
    %c0_4 = arith.constant 0 : index
    %3 = vector.load %arg1[%c0_3, %c0_4] : memref<8x16xf32, #tpu.memory_space<vmem>>, vector<8x16xf32>
    %c0_5 = arith.constant 0 : index
    %c0_6 = arith.constant 0 : index
    %4 = vector.load %arg3[%c0_5, %c0_6] : memref<16x16xf32, #tpu.memory_space<vmem>>, vector<16x16xf32>
    %cst_7 = arith.constant dense<0.000000e+00> : vector<8x16xf32>
    %5 = tpu.matmul %3, %4, %cst_7 {dimension_numbers = #tpu.dot_dimension_numbers<[1], [0], [0], [1], [0, 0, 1, 1], [], []>} : vector<8x16xf32>, vector<16x16xf32>, vector<8x16xf32> -> vector<8x16xf32>
    %6 = arith.addf %2, %5 : vector<8x16xf32>
    %c0_8 = arith.constant 0 : index
    %c0_9 = arith.constant 0 : index
    %7 = vector.load %arg5[%c0_8, %c0_9] : memref<8x16xf32, #tpu.memory_space<vmem>>, vector<8x16xf32>
    tpu.vector_store %arg5[%c0_8, %c0_9], %6 {strides = array<i32>} : memref<8x16xf32, #tpu.memory_space<vmem>>, vector<8x16xf32>,
    %c0_10 = arith.constant 0 : index
    %c0_11 = arith.constant 0 : index
    %8 = vector.load %arg5[%c0_10, %c0_11] : memref<8x16xf32, #tpu.memory_space<vmem>>, vector<8x4xf32>
    tpu.vector_store %arg5[%c0_10, %c0_11], %0 {strides = array<i32>} : memref<8x16xf32, #tpu.memory_space<vmem>>, vector<8x4xf32>,
    return
  }
  func.func @transform_0(%arg0: i32) -> (i32, i32) {
    %c0_i32 = arith.constant 0 : i32
    %c0_i32_0 = arith.constant 0 : i32
    return %arg0, %c0_i32 : i32, i32
  }
  func.func @transform_1(%arg0: i32) -> (i32, i32) {
    %c0_i32 = arith.constant 0 : i32
    %c0_i32_0 = arith.constant 0 : i32
    return %arg0, %c0_i32 : i32, i32
  }
  func.func @transform_2(%arg0: i32) -> (i32, i32) {
    %c0_i32 = arith.constant 0 : i32
    %c0_i32_0 = arith.constant 0 : i32
    %c0_i32_1 = arith.constant 0 : i32
    return %c0_i32, %c0_i32_0 : i32, i32
  }
  func.func @transform_3(%arg0: i32) -> (i32, i32) {
    %c0_i32 = arith.constant 0 : i32
    %c0_i32_0 = arith.constant 0 : i32
    %c0_i32_1 = arith.constant 0 : i32
    return %c0_i32, %c0_i32_0 : i32, i32
  }
  func.func @transform_4(%arg0: i32) -> (i32, i32) {
    %c0_i32 = arith.constant 0 : i32
    %c0_i32_0 = arith.constant 0 : i32
    return %arg0, %c0_i32 : i32, i32
  }
}

</mosaic_0001>

<llo_original>
// kernel: tpu_custom_call.1
$region0: #{tpu_custom_call.1}
  #allocation0 [shape = 'u32[]', space=smem, size = 0x4, offset = 0x4, fixed_abs, tag = 'smem constant byte address 0x4 - core index']
  #allocation1 [shape = 'u32[144,128]{1,0:T(1,128)}', space=vmem, size = 0x12000, scoped, tag = 'internal scratch']
  %s0 = inlined_call_operand.hbm [shape: f32[8,16], index: 0, kind: input, shape index: {}]
  %s1 = inlined_call_operand.vmem [shape: f32[8,4], index: 1, kind: input, shape index: {}]
  %s2 = inlined_call_operand.vmem [shape: f32[16,16], index: 2, kind: input, shape index: {}]
  %s3 = inlined_call_operand.vmem [shape: f32[4,16], index: 3, kind: input, shape index: {}]
  %s4 = inlined_call_operand.hbm [shape: f32[8,16], index: 4, kind: output, shape index: {}]
  %s5 = sld [smem:[#allocation0]]
  $region30: #{tpu_custom_call.1} parent=0
    _
  %s7 = ssub.s32 1, %s5
  %s8 = scalar_select 0, %s7, %s5
  $region1: #{tpu_custom_call.1} parent=0
    #allocation2 [shape = 'u8[4096]{0}', space=vmem, size = 0x1000, scoped, tag = 'input window, operand 0, single buffered']
    #allocation3 [shape = 's32[1]{0}', space=sflag, size = 0x4, scoped, tag = 'scoped memory for tpu_custom_call.1']
    #allocation4 [shape = 's32[1]{0}', space=sflag, size = 0x4, scoped, tag = 'scoped memory for tpu_custom_call.1']
    #allocation5 [shape = 'u8[4096]{0}', space=vmem, size = 0x1000, scoped, tag = 'output window, operand 0, single buffered']
    %9 = vsyncpa [#allocation3], 0
    %10 = vsyncpa [#allocation4], 0
    // Predicated region
    $region2: #{tpu_custom_call.1} parent=1 // pred_check
      _
    $region3: #{tpu_custom_call.1} parent=1 // pred_check_branch
      %12 = sbr.rel (0) target = $region5
    $region4: #{tpu_custom_call.1} parent=1 // pred_region
      %s14 = ssub.s32 128, 128
      %15 = vsyncadd [#allocation3], %s14
      %s17 = sshll.u32 [#allocation2], 4
      %s18 = int_to_ptr.vmem [resolvable:$true] %s17
      %20 = dma.hbm_to_vmem [thread:$0]  %s0, 128, %s18, [#allocation3]
    $region5: #{tpu_custom_call.1} parent=1 // pred_fallthru
      _
    // Predicated region
    $region6: #{tpu_custom_call.1} parent=1 // pred_check
      _
    $region7: #{tpu_custom_call.1} parent=1 // pred_check_branch
      %22 = sbr.rel (0) target = $region9
    $region8: #{tpu_custom_call.1} parent=1 // pred_region
      _
    $region9: #{tpu_custom_call.1} parent=1 // pred_fallthru
      _
    // Predicated region
    $region10: #{tpu_custom_call.1} parent=1 // pred_check
      _
    $region11: #{tpu_custom_call.1} parent=1 // pred_check_branch
      %24 = sbr.rel (0) target = $region13
    $region12: #{tpu_custom_call.1} parent=1 // pred_region
      _
    $region13: #{tpu_custom_call.1} parent=1 // pred_fallthru
      _
    // Predicated region
    $region14: #{tpu_custom_call.1} parent=1 // pred_check
      _
    $region15: #{tpu_custom_call.1} parent=1 // pred_check_branch
      %26 = sbr.rel (0) target = $region17
    $region16: #{tpu_custom_call.1} parent=1 // pred_region
      _
    $region17: #{tpu_custom_call.1} parent=1 // pred_fallthru
      _
    // Predicated region
    $region18: #{tpu_custom_call.1} parent=1 // pred_check
      _
    $region19: #{tpu_custom_call.1} parent=1 // pred_check_branch
      %28 = sbr.rel (0) target = $region21
    $region20: #{tpu_custom_call.1} parent=1 // pred_region
      %29 = dma.done [#allocation3], 128
    $region21: #{tpu_custom_call.1} parent=1 // pred_fallthru
      _
    %v30 = vld [vmem:[%s1] sm:$0xff]
    %v31 = vld [vmem:[%s3] sm:$0xf]
    %v32 = vld [vmem:[#allocation2] sm:$0xff]
    %v33 = vld [vmem:[%s2] sm:$0xff]
    %v34 = vld [vmem:[%s2 + $0x8] sm:$0xff]
    %vm35 = vcmask 130048
    %v37 = vsel %vm35, %v32, 0
    %39 = vmatprep.subr.mxu0 0.0
    %40 = vmatpush1.msra.mxu0 %v33
    %41 = vmatprep.subr.mxu0 0.0
    %42 = vmatpush1.msra.mxu0 %v34
    %43 = vmatprep.subr.mxu0 0.0
    %44 = vmatpush1.msra.mxu0 0.0
    %45 = vmatprep.subr.mxu0 0.0
    %46 = vmatpush1.msra.mxu0 0.0
    %47 = vmatprep.subr.mxu0 0.0
    %48 = vmatpush1.msra.mxu0 0.0
    %49 = vmatprep.subr.mxu0 0.0
    %50 = vmatpush1.msra.mxu0 0.0
    %51 = vmatprep.subr.mxu0 0.0
    %52 = vmatpush1.msra.mxu0 0.0
    %53 = vmatprep.subr.mxu0 0.0
    %54 = vmatpush1.msra.mxu0 0.0
    %55 = vmatprep.subr.mxu0 0.0
    %56 = vmatpush1.msra.mxu0 0.0
    %57 = vmatprep.subr.mxu0 0.0
    %58 = vmatpush1.msra.mxu0 0.0
    %59 = vmatprep.subr.mxu0 0.0
    %60 = vmatpush1.msra.mxu0 0.0
    %61 = vmatprep.subr.mxu0 0.0
    %62 = vmatpush1.msra.mxu0 0.0
    %63 = vmatprep.subr.mxu0 0.0
    %64 = vmatpush1.msra.mxu0 0.0
    %65 = vmatprep.subr.mxu0 0.0
    %66 = vmatpush1.msra.mxu0 0.0
    %67 = vmatprep.subr.mxu0 0.0
    %68 = vmatpush1.msra.mxu0 0.0
    %69 = vmatprep.subr.mxu0 0.0
    %70 = vmatpush1.msra.mxu0 0.0
    %71 = vmatprep.subr.mxu0 0.0
    %72 = vmatpush1.msra.mxu0 0.0
    %73 = vmatprep.subr.mxu0 0.0
    %74 = vmatpush1.msra.mxu0 0.0
    %75 = vmatprep.subr.mxu0 0.0
    %76 = vmatpush1.msra.mxu0 0.0
    %77 = vmatprep.subr.mxu0 0.0
    %78 = vmatpush1.msra.mxu0 0.0
    %79 = vmatprep.subr.mxu0 0.0
    %80 = vmatpush1.msra.mxu0 0.0
    %81 = vmatprep.subr.mxu0 0.0
    %82 = vmatpush1.msra.mxu0 0.0
    %83 = vmatprep.subr.mxu0 0.0
    %84 = vmatpush1.msra.mxu0 0.0
    %85 = vmatprep.subr.mxu0 0.0
    %86 = vmatpush1.msra.mxu0 0.0
    %87 = vmatprep.subr.mxu0 0.0
    %88 = vmatpush1.msra.mxu0 0.0
    %89 = vmatprep.subr.mxu0 0.0
    %90 = vmatpush1.msra.mxu0 0.0
    %91 = vmatprep.subr.mxu0 0.0
    %92 = vmatpush1.msra.mxu0 0.0
    %93 = vmatprep.subr.mxu0 0.0
    %94 = vmatpush1.msra.mxu0 0.0
    %95 = vmatprep.subr.mxu0 0.0
    %96 = vmatpush1.msra.mxu0 0.0
    %97 = vmatprep.subr.mxu0 0.0
    %98 = vmatpush1.msra.mxu0 0.0
    %99 = vmatprep.subr.mxu0 0.0
    %100 = vmatpush1.msra.mxu0 0.0
    %101 = vmatprep.subr.mxu0 0.0
    %102 = vmatpush1.msra.mxu0 0.0
    %103 = vmatprep.mubr.f32.mxu0 0.0
    %104 = vmatmul.mubr.f32.gmra.mrb[0].mxu0 %v37
    %v105 = vpop.f32.mrb[0].mxu0
    %v106 = vadd.f32 0.0, %v105
    %v107 = vpop.f32.mrb[0].mxu0
    %108 = vdwg.mxu0
    %vm109 = vcmask 31744
    %v111 = vsel %vm109, %v30, 0
    %vm113 = vcmask 1043456
    %v115 = vsel %vm113, %v31, 0
    %117 = vmatprep.subr.mxu0 0.0
    %118 = vmatpush1.msra.mxu0 %v115
    %119 = vmatprep.subr.mxu0 0.0
    %120 = vmatpush1.msra.mxu0 0.0
    %121 = vmatprep.subr.mxu0 0.0
    %122 = vmatpush1.msra.mxu0 0.0
    %123 = vmatprep.subr.mxu0 0.0
    %124 = vmatpush1.msra.mxu0 0.0
    %125 = vmatprep.subr.mxu0 0.0
    %126 = vmatpush1.msra.mxu0 0.0
    %127 = vmatprep.subr.mxu0 0.0
    %128 = vmatpush1.msra.mxu0 0.0
    %129 = vmatprep.subr.mxu0 0.0
    %130 = vmatpush1.msra.mxu0 0.0
    %131 = vmatprep.subr.mxu0 0.0
    %132 = vmatpush1.msra.mxu0 0.0
    %133 = vmatprep.subr.mxu0 0.0
    %134 = vmatpush1.msra.mxu0 0.0
    %135 = vmatprep.subr.mxu0 0.0
    %136 = vmatpush1.msra.mxu0 0.0
    %137 = vmatprep.subr.mxu0 0.0
    %138 = vmatpush1.msra.mxu0 0.0
    %139 = vmatprep.subr.mxu0 0.0
    %140 = vmatpush1.msra.mxu0 0.0
    %141 = vmatprep.subr.mxu0 0.0
    %142 = vmatpush1.msra.mxu0 0.0
    %143 = vmatprep.subr.mxu0 0.0
    %144 = vmatpush1.msra.mxu0 0.0
    %145 = vmatprep.subr.mxu0 0.0
    %146 = vmatpush1.msra.mxu0 0.0
    %147 = vmatprep.subr.mxu0 0.0
    %148 = vmatpush1.msra.mxu0 0.0
    %149 = vmatprep.subr.mxu0 0.0
    %150 = vmatpush1.msra.mxu0 0.0
    %151 = vmatprep.subr.mxu0 0.0
    %152 = vmatpush1.msra.mxu0 0.0
    %153 = vmatprep.subr.mxu0 0.0
    %154 = vmatpush1.msra.mxu0 0.0
    %155 = vmatprep.subr.mxu0 0.0
    %156 = vmatpush1.msra.mxu0 0.0
    %157 = vmatprep.subr.mxu0 0.0
    %158 = vmatpush1.msra.mxu0 0.0
    %159 = vmatprep.subr.mxu0 0.0
    %160 = vmatpush1.msra.mxu0 0.0
    %161 = vmatprep.subr.mxu0 0.0
    %162 = vmatpush1.msra.mxu0 0.0
    %163 = vmatprep.subr.mxu0 0.0
    %164 = vmatpush1.msra.mxu0 0.0
    %165 = vmatprep.subr.mxu0 0.0
    %166 = vmatpush1.msra.mxu0 0.0
    %167 = vmatprep.subr.mxu0 0.0
    %168 = vmatpush1.msra.mxu0 0.0
    %169 = vmatprep.subr.mxu0 0.0
    %170 = vmatpush1.msra.mxu0 0.0
    %171 = vmatprep.subr.mxu0 0.0
    %172 = vmatpush1.msra.mxu0 0.0
    %173 = vmatprep.subr.mxu0 0.0
    %174 = vmatpush1.msra.mxu0 0.0
    %175 = vmatprep.subr.mxu0 0.0
    %176 = vmatpush1.msra.mxu0 0.0
    %177 = vmatprep.subr.mxu0 0.0
    %178 = vmatpush1.msra.mxu0 0.0
    %179 = vmatprep.subr.mxu0 0.0
    %180 = vmatpush1.msra.mxu0 0.0
    %181 = vmatprep.mubr.f32.mxu0 0.0
    %182 = vmatmul.mubr.f32.gmra.mrb[0].mxu0 %v111
    %v183 = vpop.f32.mrb[0].mxu0
    %v184 = vadd.f32 %v106, %v183
    %v185 = vpop.f32.mrb[0].mxu0
    %186 = vdwg.mxu0
    %187 = vst.msk [vmem:[#allocation5] sm:$0xff] %vm35, %v184
    %188 = vst.msk [vmem:[#allocation5] sm:$0xff] %vm109, %v30
    // Predicated region
    $region22: #{tpu_custom_call.1} parent=1 // pred_check
      _
    $region23: #{tpu_custom_call.1} parent=1 // pred_check_branch
      %190 = sbr.rel (0) target = $region25
    $region24: #{tpu_custom_call.1} parent=1 // pred_region
      %s192 = ssub.s32 128, 128
      %193 = vsyncadd [#allocation4], %s192
      %s195 = sshll.u32 [#allocation5], 4
      %s196 = int_to_ptr.vmem [resolvable:$true] %s195
      %198 = dma.vmem_to_hbm [thread:$0]  %s196, 128, %s4, [#allocation4]
    $region25: #{tpu_custom_call.1} parent=1 // pred_fallthru
      _
    // Predicated region
    $region26: #{tpu_custom_call.1} parent=1 // pred_check
      _
    $region27: #{tpu_custom_call.1} parent=1 // pred_check_branch
      %200 = sbr.rel (0) target = $region29
    $region28: #{tpu_custom_call.1} parent=1 // pred_region
      %201 = dma.done [#allocation4], 128
    $region29: #{tpu_custom_call.1} parent=1 // pred_fallthru
      _
    %202 = vsyncpa [#allocation3], 1
    %203 = vsyncpa [#allocation4], 1

</llo_original>
